<compile_context>
chip_gen: v6e
topology: v6e:2x2x1
jax: 0.10.0
libtpu: 0.0.40
codegen_flags: <defaults>
</compile_context>

<pallas_src>
import jax
import jax.numpy as jnp
from jax.experimental import pallas as pl
from jax.experimental.pallas import tpu as pltpu


def clip_loss_kernel(tau_ref, est_ref, cand_ref, diag_ref, out_ref):
    # tau_ref : SMEM (1, 1) f32    learnable temperature
    # est_ref : VMEM (TB, N)       one tile of estimates (native dtype)
    # cand_ref: VMEM (Bp, N) bf16  full candidate set, pre-normalized (resident: const index_map)
    # diag_ref: VMEM (TB, N) bf16  pre-normalized candidate rows matching this tile's estimates
    # out_ref : VMEM (TB, 1) f32   per-row loss for this tile
    est = est_ref[...].astype(jnp.float32)       # [TB, N]
    cand = cand_ref[...]                         # [Bp, N] bf16 (already row-normalized)
    diag_c = diag_ref[...].astype(jnp.float32)   # [TB, N]
    tau = tau_ref[0, 0]

    # Row-normalize estimates and fold 1/tau into the scale so the [TB, Bp] score block
    # never needs a post-matmul scaling pass.  rsqrt(x + 1e-16) == 1/(1e-8 + ||e||) up to
    # O(1e-8) relative error, and is safe for all-zero (padded) rows.
    sumsq = jnp.sum(est * est, axis=1, keepdims=True)            # [TB, 1]
    e_scale = jax.lax.rsqrt(sumsq + 1e-16) / tau
    e_n = est * e_scale                                          # [TB, N] f32, normalized/tau
    e_bf = e_n.astype(jnp.bfloat16)                              # bf16 MXU feed (always)

    # scores[b, o] = <e_n_b, c_n_o>  (contract over N directly; f32 accumulation)
    scores = jax.lax.dot_general(
        e_bf, cand,
        dimension_numbers=(((1,), (1,)), ((), ())),
        preferred_element_type=jnp.float32)                      # [TB, Bp]

    # softmax over candidates (dim=1) -> "probabilities"
    m1 = jnp.max(scores, axis=1, keepdims=True)                  # [TB, 1]
    e1 = jnp.exp(scores - m1)                                    # [TB, Bp]
    inv_denom = 1.0 / jnp.sum(e1, axis=1, keepdims=True)         # exact; [TB, 1] is cheap
    probs = e1 * inv_denom                                       # [TB, Bp]

    # F.cross_entropy treats `probs` as logits:
    #   loss_i = logsumexp_j(probs[i, :]) - probs[i, i_global]
    # probs in [0, 1], so exp() cannot overflow -> no second max-subtraction needed.
    lse = jnp.log(jnp.sum(jnp.exp(probs), axis=1, keepdims=True))  # [TB, 1]

    # Diagonal element via a direct [TB, N] dot against the matching candidate rows
    # (replaces the [TB, Bp] iota/mask/where path).  Padded rows are zero -> discarded later.
    diag_score = jnp.sum(e_n * diag_c, axis=1, keepdims=True)    # [TB, 1]
    diag_prob = jnp.exp(diag_score - m1) * inv_denom             # [TB, 1]

    out_ref[...] = lse - diag_prob


def _round_up(x, m):
    return ((x + m - 1) // m) * m


def _default_block_b():
    """TB=128 on v5e (128x128 MXU, smaller intermediates); 256 on v6e/v7x."""
    try:
        kind = jax.devices()[0].device_kind.lower()
    except Exception:
        return 256
    if "v5 lite" in kind or "v5e" in kind or "v5litepod" in kind:
        return 128
    return 256


def _vmem_limit_bytes(Bp, N, TB):
    """Generation-aware VMEM cap derived from the actual footprint."""
    need = (2 * Bp * N * 2          # resident bf16 candidates (pipeline double-buffer)
            + 2 * 2 * TB * N * 4    # estimate + diag tiles, double-buffered (f32 worst case)
            + 2 * TB * 4            # per-row output, double-buffered
            + 3 * TB * Bp * 4       # live [TB, Bp] f32 slabs in the body
            + (4 << 20))            # scratch / spill slack
    try:
        cap = int(getattr(pltpu.get_tpu_info(), "vmem_capacity_bytes", 0)) or (64 << 20)
    except Exception:
        cap = 64 << 20              # conservative fallback (v7x per-TC physical)
    # ~75% of physical per TensorCore: ~96 MiB on v5e/v6e (128 MiB), ~48 MiB on v7x (64 MiB).
    return int(min(max(need, 32 << 20), (cap * 3) // 4))


def clip_loss_1d(estimate, candidate, temp_tau=1.0, block_b=None):
    """estimate: [B, N], candidate: [Bp, N] with B <= Bp. Returns scalar f32 loss."""
    B, N = estimate.shape
    Bp, N2 = candidate.shape
    assert N == N2
    assert B <= Bp, "need at least as many targets as estimates"

    # --- hoisted (once, outside the grid loop): row-normalize candidates, store bf16 ---
    cand_f = candidate.astype(jnp.float32)
    inv_nc = 1.0 / (1e-8 + jnp.linalg.norm(cand_f, axis=1, keepdims=True))
    cand_n = (cand_f * inv_nc).astype(jnp.bfloat16)              # [Bp, N] bf16, resident

    if block_b is None:
        block_b = _default_block_b()
    TB = min(block_b, _round_up(B, 8))
    B_pad = _round_up(B, TB)
    num_tiles = B_pad // TB

    est = estimate
    if B_pad != B:
        est = jnp.pad(est, ((0, B_pad - B), (0, 0)))

    # Per-tile "matching" candidate rows: row i is the candidate paired with estimate row i
    # (zero past B).  Avoids in-kernel iota/mask extraction and any OOB slicing on tail tiles.
    diag_cand = cand_n[:B]
    if B_pad != B:
        diag_cand = jnp.pad(diag_cand, ((0, B_pad - B), (0, 0)))

    tau = jnp.full((1, 1), temp_tau, dtype=jnp.float32)

    per_row = pl.pallas_call(
        clip_loss_kernel,
        out_shape=jax.ShapeDtypeStruct((B_pad, 1), jnp.float32),
        grid=(num_tiles,),
        in_specs=[
            pl.BlockSpec(memory_space=pltpu.MemorySpace.SMEM),   # temp_tau (scalar param)
            pl.BlockSpec((TB, N), lambda i: (i, 0)),             # estimates tile
            pl.BlockSpec((Bp, N), lambda i: (0, 0)),             # candidates (VMEM-resident)
            pl.BlockSpec((TB, N), lambda i: (i, 0)),             # matching candidate rows
        ],
        out_specs=pl.BlockSpec((TB, 1), lambda i: (i, 0)),       # per-row losses (tiny writeback)
        compiler_params=pltpu.CompilerParams(
            dimension_semantics=("parallel",),                   # v7x: shard grid across 2 TCs
            vmem_limit_bytes=_vmem_limit_bytes(Bp, N, TB)),
    )(tau, est, cand_n, diag_cand)

    return jnp.mean(per_row[:B, 0])


if __name__ == "__main__":
    key = jax.random.PRNGKey(0)
    k1, k2 = jax.random.split(key)
    B, Bp, N = 16, 32, 128   # small, (8,128)-friendly shapes; B <= Bp as required
    estimate = jax.random.normal(k1, (B, N), dtype=jnp.float32)
    candidate = jax.random.normal(k2, (Bp, N), dtype=jnp.float32)

    # Tiled path: two estimate tiles of 8 rows -> exercises the grid + per-tile diag rows.
    loss_tiled = clip_loss_1d(estimate, candidate, temp_tau=1.0, block_b=8)
    # Default path: single tile (device-dependent default TB, collapses to 16 here).
    loss_single = clip_loss_1d(estimate, candidate, temp_tau=1.0)
    jax.block_until_ready((loss_tiled, loss_single))

    # Pure-JAX f32 reference (same math as the PyTorch module, no Pallas).
    def ref(e, c, tau=1.0):
        e = e.astype(jnp.float32)
        c = c.astype(jnp.float32)
        inv_e = 1.0 / (1e-8 + jnp.linalg.norm(e, axis=1))
        inv_c = 1.0 / (1e-8 + jnp.linalg.norm(c, axis=1))
        s = jnp.einsum('bn,on,b,o->bo', e, c, inv_e, inv_c) / tau
        p = jax.nn.softmax(s, axis=1)
        lse = jax.scipy.special.logsumexp(p, axis=1)
        d = p[jnp.arange(e.shape[0]), jnp.arange(e.shape[0])]
        return jnp.mean(lse - d)

    ref_loss = ref(estimate, candidate)
    # Tolerance 1e-3 covers the bf16 MXU operands (f32 accumulation); observed error << 1e-3.
    assert jnp.allclose(loss_tiled, ref_loss, atol=1e-3, rtol=1e-3), (loss_tiled, ref_loss)
    assert jnp.allclose(loss_single, ref_loss, atol=1e-3, rtol=1e-3), (loss_single, ref_loss)
    print("KERNEL_OK")
</pallas_src>

<mosaic_0001>
module attributes {stable_mosaic.version = 11 : i64} {
  func.func @clip_loss_kernel(%arg0: i32, %arg1: memref<1x1xf32, #tpu.memory_space<smem>>, %arg2: memref<8x128xf32, #tpu.memory_space<vmem>>, %arg3: memref<32x128xbf16, #tpu.memory_space<vmem>>, %arg4: memref<8x128xbf16, #tpu.memory_space<vmem>>, %arg5: memref<8x1xf32, #tpu.memory_space<vmem>>) attributes {dimension_semantics = [#tpu.dimension_semantics<parallel>], iteration_bounds = array<i64: 2>, scalar_prefetch = 0 : i64, scratch_operands = 0 : i64, tpu.core_type = #tpu.core_type<tc>, window_params = [{transform_indices = @transform_0, window_bounds = array<i64: 1, 1>}, {transform_indices = @transform_1, window_bounds = array<i64: 8, 128>}, {pipeline_mode = #tpu.pipeline_mode<synchronous>, transform_indices = @transform_2, window_bounds = array<i64: 32, 128>}, {transform_indices = @transform_3, window_bounds = array<i64: 8, 128>}, {transform_indices = @transform_4, window_bounds = array<i64: 8, 1>}]} {
    %c0 = arith.constant 0 : index
    %c0_0 = arith.constant 0 : index
    %0 = vector.load %arg2[%c0, %c0_0] : memref<8x128xf32, #tpu.memory_space<vmem>>, vector<8x128xf32>
    %c0_1 = arith.constant 0 : index
    %c0_2 = arith.constant 0 : index
    %1 = vector.load %arg3[%c0_1, %c0_2] : memref<32x128xbf16, #tpu.memory_space<vmem>>, vector<32x128xbf16>
    %c0_3 = arith.constant 0 : index
    %c0_4 = arith.constant 0 : index
    %2 = vector.load %arg4[%c0_3, %c0_4] : memref<8x128xbf16, #tpu.memory_space<vmem>>, vector<8x128xbf16>
    %3 = arith.extf %2 : vector<8x128xbf16> to vector<8x128xf32>
    %c0_5 = arith.constant 0 : index
    %c0_6 = arith.constant 0 : index
    %4 = memref.load %arg1[%c0_5, %c0_6] : memref<1x1xf32, #tpu.memory_space<smem>>
    %5 = arith.mulf %0, %0 : vector<8x128xf32>
    %cst = arith.constant dense<0.000000e+00> : vector<8xf32>
    %6 = vector.multi_reduction <add>, %5, %cst [1] : vector<8x128xf32> to vector<8xf32>
    %7 = vector.shape_cast %6 : vector<8xf32> to vector<8x1xf32>
    %cst_7 = arith.constant 1.000000e-16 : f32
    %8 = vector.broadcast %cst_7 : f32 to vector<8x1xf32>
    %9 = arith.addf %7, %8 : vector<8x1xf32>
    %10 = math.rsqrt %9 : vector<8x1xf32>
    %11 = vector.broadcast %4 : f32 to vector<8x1xf32>
    %12 = arith.divf %10, %11 : vector<8x1xf32>
    %13 = vector.broadcast %12 : vector<8x1xf32> to vector<8x128xf32>
    %14 = arith.mulf %0, %13 : vector<8x128xf32>
    %15 = arith.truncf %14 : vector<8x128xf32> to vector<8x128xbf16>
    %cst_8 = arith.constant dense<0.000000e+00> : vector<8x32xf32>
    %16 = tpu.matmul %15, %1, %cst_8 {dimension_numbers = #tpu.dot_dimension_numbers<[1], [1], [0], [0], [0, 0, 1, 0], [], []>} : vector<8x128xbf16>, vector<32x128xbf16>, vector<8x32xf32> -> vector<8x32xf32>
    %cst_9 = arith.constant dense<0xFF800000> : vector<8xf32>
    %17 = vector.multi_reduction <maximumf>, %16, %cst_9 [1] : vector<8x32xf32> to vector<8xf32>
    %18 = vector.shape_cast %17 : vector<8xf32> to vector<8x1xf32>
    %19 = vector.broadcast %18 : vector<8x1xf32> to vector<8x32xf32>
    %20 = arith.subf %16, %19 : vector<8x32xf32>
    %21 = math.exp %20 : vector<8x32xf32>
    %cst_10 = arith.constant dense<0.000000e+00> : vector<8xf32>
    %22 = vector.multi_reduction <add>, %21, %cst_10 [1] : vector<8x32xf32> to vector<8xf32>
    %23 = vector.shape_cast %22 : vector<8xf32> to vector<8x1xf32>
    %cst_11 = arith.constant 1.000000e+00 : f32
    %24 = vector.broadcast %cst_11 : f32 to vector<8x1xf32>
    %25 = arith.divf %24, %23 : vector<8x1xf32>
    %26 = vector.broadcast %25 : vector<8x1xf32> to vector<8x32xf32>
    %27 = arith.mulf %21, %26 : vector<8x32xf32>
    %28 = math.exp %27 : vector<8x32xf32>
    %cst_12 = arith.constant dense<0.000000e+00> : vector<8xf32>
    %29 = vector.multi_reduction <add>, %28, %cst_12 [1] : vector<8x32xf32> to vector<8xf32>
    %30 = vector.shape_cast %29 : vector<8xf32> to vector<8x1xf32>
    %31 = math.log %30 : vector<8x1xf32>
    %32 = arith.mulf %14, %3 : vector<8x128xf32>
    %cst_13 = arith.constant dense<0.000000e+00> : vector<8xf32>
    %33 = vector.multi_reduction <add>, %32, %cst_13 [1] : vector<8x128xf32> to vector<8xf32>
    %34 = vector.shape_cast %33 : vector<8xf32> to vector<8x1xf32>
    %35 = arith.subf %34, %18 : vector<8x1xf32>
    %36 = math.exp %35 : vector<8x1xf32>
    %37 = arith.mulf %36, %25 : vector<8x1xf32>
    %38 = arith.subf %31, %37 : vector<8x1xf32>
    %c0_14 = arith.constant 0 : index
    %c0_15 = arith.constant 0 : index
    %39 = vector.load %arg5[%c0_14, %c0_15] : memref<8x1xf32, #tpu.memory_space<vmem>>, vector<8x1xf32>
    tpu.vector_store %arg5[%c0_14, %c0_15], %38 {strides = array<i32>} : memref<8x1xf32, #tpu.memory_space<vmem>>, vector<8x1xf32>,
    return
  }
  func.func @transform_0(%arg0: i32) -> (i32, i32) {
    %c0_i32 = arith.constant 0 : i32
    %c0_i32_0 = arith.constant 0 : i32
    %c0_i32_1 = arith.constant 0 : i32
    return %c0_i32, %c0_i32_0 : i32, i32
  }
  func.func @transform_1(%arg0: i32) -> (i32, i32) {
    %c0_i32 = arith.constant 0 : i32
    %c0_i32_0 = arith.constant 0 : i32
    return %arg0, %c0_i32 : i32, i32
  }
  func.func @transform_2(%arg0: i32) -> (i32, i32) {
    %c0_i32 = arith.constant 0 : i32
    %c0_i32_0 = arith.constant 0 : i32
    %c0_i32_1 = arith.constant 0 : i32
    return %c0_i32, %c0_i32_0 : i32, i32
  }
  func.func @transform_3(%arg0: i32) -> (i32, i32) {
    %c0_i32 = arith.constant 0 : i32
    %c0_i32_0 = arith.constant 0 : i32
    return %arg0, %c0_i32 : i32, i32
  }
  func.func @transform_4(%arg0: i32) -> (i32, i32) {
    %c0_i32 = arith.constant 0 : i32
    %c0_i32_0 = arith.constant 0 : i32
    return %arg0, %c0_i32 : i32, i32
  }
}

</mosaic_0001>

<llo_original>
// kernel: tpu_custom_call.1
$region0: #{tpu_custom_call.1}
  #allocation0 [shape = 'u32[]', space=smem, size = 0x4, offset = 0x4, fixed_abs, tag = 'smem constant byte address 0x4 - core index']
  #allocation1 [shape = 'u32[144,128]{1,0:T(1,128)}', space=vmem, size = 0x12000, scoped, tag = 'internal scratch']
  #allocation2 [shape = 'f32[1,1]{1,0:T(1,128)S(6)}', space=smem, size = 0x200, scoped, tag = 'scoped memory for tpu_custom_call.1']
  %s0 = inlined_call_operand.<no memory space> [shape: f32[1,1], index: 0, kind: input, shape index: {}]
  %s1 = inlined_call_operand.hbm [shape: f32[16,128], index: 1, kind: input, shape index: {}]
  %s2 = inlined_call_operand.hbm [shape: bf16[32,128], index: 2, kind: input, shape index: {}]
  %s3 = inlined_call_operand.hbm [shape: bf16[16,128], index: 3, kind: input, shape index: {}]
  %s4 = inlined_call_operand.vmem [shape: f32[16,1], index: 4, kind: output, shape index: {}]
  %s5 = sld [smem:[#allocation0]]
  $region61: #{tpu_custom_call.1} parent=0
    _
  %s7 = ssub.s32 1, %s5
  %s8 = scalar_select 0, %s7, %s5
  %9 = sst [smem:[#allocation2]] %s0
  $region1: #{tpu_custom_call.1} parent=0
    #allocation3 [shape = 'u8[8192]{0}', space=vmem, size = 0x2000, scoped, tag = 'input window, operand 1']
    #allocation4 [shape = 's32[2]{0}', space=sflag, size = 0x8, scoped, tag = 'scoped memory for tpu_custom_call.1']
    #allocation5 [shape = 'u8[8192]{0}', space=vmem, size = 0x2000, scoped, tag = 'input window, operand 2, single buffered']
    #allocation6 [shape = 's32[1]{0}', space=sflag, size = 0x4, scoped, tag = 'scoped memory for tpu_custom_call.1']
    #allocation7 [shape = 'u8[4096]{0}', space=vmem, size = 0x1000, scoped, tag = 'input window, operand 3']
    %10 = vsyncpa [#allocation4], 0
    %s11 = scalar_lea.sflag [#allocation4], 1
    %12 = vsyncpa %s11, 0
    %13 = vsyncpa [#allocation6], 0
    loop: start=0, step=1, limit=4
    $region2: #{tpu_custom_call.1} parent=1 // loop_pre_header
      _
    $region3: #{tpu_custom_call.1} parent=1 // loop_header
      %s15 = sphi 0, %s19
      %p16 = scmp.ge.s32.totalorder %s15, 4
      %s23 = sphi 0, %s23
      %s25 = sphi 0, %s23
      %s26 = sphi 0, %s25
      %s40 = sphi 0, %s26
      %s46 = sphi 0, %s48
      %s49 = sphi 0, %s46
      %s50 = sphi 0, %s49
      %s66 = sphi 0, %s50
      %s70 = sphi 0, %s70
      %s72 = sphi 0, %s70
      %s73 = sphi 0, %s72
      %s87 = sphi 0, %s73
      %s93 = sphi 0, %s95
      %s96 = sphi 0, %s93
      %s97 = sphi 0, %s96
      %s113 = sphi 0, %s97
      %s119 = sphi 0, %s121
      %s122 = sphi 0, %s119
      %s123 = sphi 0, %s122
      %s139 = sphi 0, %s123
    $region4: #{tpu_custom_call.1} parent=1 // loop_header_branch
      %18 = sbr.rel (%p16) target = $region8
    $region5: #{tpu_custom_call.1} parent=1 // loop_body
      %s20 = ssub.s32 %s15, 1
      %s21 = ssub.s32 %s15, 2
      %s22 = sadd.s32 %s15, 1
      %s24 = sadd.s32 %s23, 1
      %p27 = scmp.eq.s32.totalorder %s15, 1
      %p28 = scmp.ne.s32.totalorder %s23, %s25
      %p29 = scmp.eq.s32.totalorder %s15, 0
      %p30 = por %p28, %p29
      %p31 = scmp.ne.s32.totalorder %s23, %s25
      %p32 = scmp.eq.s32.totalorder %s20, 1
      %p33 = por %p31, %p32
      %p34 = scmp.ne.s32.totalorder %s25, %s26
      %p35 = scmp.eq.s32.totalorder %s20, 0
      %p36 = por %p34, %p35
      %p37 = scmp.ne.s32.totalorder %s25, %s26
      %p38 = scmp.eq.s32.totalorder %s21, 1
      %p39 = por %p37, %p38
      %p41 = scmp.ne.s32.totalorder %s26, %s40
      %p42 = scmp.eq.s32.totalorder %s21, 0
      %p43 = por %p41, %p42
      %s44 = ssub.s32 %s15, %s22
      %p45 = scmp.eq.s32.totalorder %s44, 0
      %s47 = sadd.s32 %s46, 1
      %s48 = scalar_select %p45, %s46, %s47
      %p51 = pneg %p45
      %p52 = scmp.eq.s32.totalorder %s15, 1
      %p53 = por %p51, %p52
      %p54 = scmp.ne.s32.totalorder %s46, %s49
      %p55 = scmp.eq.s32.totalorder %s15, 0
      %p56 = por %p54, %p55
      %p57 = scmp.ne.s32.totalorder %s46, %s49
      %p58 = scmp.eq.s32.totalorder %s20, 1
      %p59 = por %p57, %p58
      %p60 = scmp.ne.s32.totalorder %s49, %s50
      %p61 = scmp.eq.s32.totalorder %s20, 0
      %p62 = por %p60, %p61
      %p63 = scmp.ne.s32.totalorder %s49, %s50
      %p64 = scmp.eq.s32.totalorder %s21, 1
      %p65 = por %p63, %p64
      %p67 = scmp.ne.s32.totalorder %s50, %s66
      %p68 = scmp.eq.s32.totalorder %s21, 0
      %p69 = por %p67, %p68
      %s71 = sadd.s32 %s70, 1
      %p74 = scmp.eq.s32.totalorder %s15, 1
      %p75 = scmp.ne.s32.totalorder %s70, %s72
      %p76 = scmp.eq.s32.totalorder %s15, 0
      %p77 = por %p75, %p76
      %p78 = scmp.ne.s32.totalorder %s70, %s72
      %p79 = scmp.eq.s32.totalorder %s20, 1
      %p80 = por %p78, %p79
      %p81 = scmp.ne.s32.totalorder %s72, %s73
      %p82 = scmp.eq.s32.totalorder %s20, 0
      %p83 = por %p81, %p82
      %p84 = scmp.ne.s32.totalorder %s72, %s73
      %p85 = scmp.eq.s32.totalorder %s21, 1
      %p86 = por %p84, %p85
      %p88 = scmp.ne.s32.totalorder %s73, %s87
      %p89 = scmp.eq.s32.totalorder %s21, 0
      %p90 = por %p88, %p89
      %s91 = ssub.s32 %s15, %s22
      %p92 = scmp.eq.s32.totalorder %s91, 0
      %s94 = sadd.s32 %s93, 1
      %s95 = scalar_select %p92, %s93, %s94
      %p98 = pneg %p92
      %p99 = scmp.eq.s32.totalorder %s15, 1
      %p100 = por %p98, %p99
      %p101 = scmp.ne.s32.totalorder %s93, %s96
      %p102 = scmp.eq.s32.totalorder %s15, 0
      %p103 = por %p101, %p102
      %p104 = scmp.ne.s32.totalorder %s93, %s96
      %p105 = scmp.eq.s32.totalorder %s20, 1
      %p106 = por %p104, %p105
      %p107 = scmp.ne.s32.totalorder %s96, %s97
      %p108 = scmp.eq.s32.totalorder %s20, 0
      %p109 = por %p107, %p108
      %p110 = scmp.ne.s32.totalorder %s96, %s97
      %p111 = scmp.eq.s32.totalorder %s21, 1
      %p112 = por %p110, %p111
      %p114 = scmp.ne.s32.totalorder %s97, %s113
      %p115 = scmp.eq.s32.totalorder %s21, 0
      %p116 = por %p114, %p115
      %s117 = ssub.s32 %s15, %s22
      %p118 = scmp.eq.s32.totalorder %s117, 0
      %s120 = sadd.s32 %s119, 1
      %s121 = scalar_select %p118, %s119, %s120
      %p124 = pneg %p118
      %p125 = scmp.eq.s32.totalorder %s15, 1
      %p126 = por %p124, %p125
      %p127 = scmp.ne.s32.totalorder %s119, %s122
      %p128 = scmp.eq.s32.totalorder %s15, 0
      %p129 = por %p127, %p128
      %p130 = scmp.ne.s32.totalorder %s119, %s122
      %p131 = scmp.eq.s32.totalorder %s20, 1
      %p132 = por %p130, %p131
      %p133 = scmp.ne.s32.totalorder %s122, %s123
      %p134 = scmp.eq.s32.totalorder %s20, 0
      %p135 = por %p133, %p134
      %p136 = scmp.ne.s32.totalorder %s122, %s123
      %p137 = scmp.eq.s32.totalorder %s21, 1
      %p138 = por %p136, %p137
      %p140 = scmp.ne.s32.totalorder %s123, %s139
      %p141 = scmp.eq.s32.totalorder %s21, 0
      %p142 = por %p140, %p141
      %p143 = scmp.le.s32.totalorder 1, %s15
      %p144 = scmp.lt.s32.totalorder %s15, 3
      %p145 = pnand %p143, %p144
      %p146 = pneg %p145
      // Predicated region
      $region9: #{tpu_custom_call.1} parent=5 // pred_check
        _
      $region10: #{tpu_custom_call.1} parent=5 // pred_check_branch
        %148 = sbr.rel (%p145) target = $region12
      $region11: #{tpu_custom_call.1} parent=5 // pred_region
        %s149 = ssub.s32 %s15, 1
        // Predicated region
        $region13: #{tpu_custom_call.1} parent=11 // pred_check
          %p150 = pneg %p36
        $region14: #{tpu_custom_call.1} parent=11 // pred_check_branch
          %152 = sbr.rel (%p150) target = $region16
        $region15: #{tpu_custom_call.1} parent=11 // pred_region
          _
        $region16: #{tpu_custom_call.1} parent=11 // pred_fallthru
          _
        // Predicated region
        $region17: #{tpu_custom_call.1} parent=11 // pred_check
          %p153 = pneg %p83
        $region18: #{tpu_custom_call.1} parent=11 // pred_check_branch
          %155 = sbr.rel (%p153) target = $region20
        $region19: #{tpu_custom_call.1} parent=11 // pred_region
          %s157 = ssub.s32 256, 256
          %158 = vsyncadd [#allocation6], %s157
          %s159 = sshll.u32 [#allocation5], 4
          %s160 = int_to_ptr.vmem [resolvable:$true] %s159
          %165 = dma.hbm_to_vmem [thread:$0]  %s2, 256, %s160, [#allocation6], 64, 64, 4
        $region20: #{tpu_custom_call.1} parent=11 // pred_fallthru
          _
      $region12: #{tpu_custom_call.1} parent=5 // pred_fallthru
        _
      %p166 = scmp.lt.s32.totalorder %s15, 2
      // Predicated region
      $region21: #{tpu_custom_call.1} parent=5 // pred_check
        %p167 = pneg %p166
      $region22: #{tpu_custom_call.1} parent=5 // pred_check_branch
        %169 = sbr.rel (%p167) target = $region24
      $region23: #{tpu_custom_call.1} parent=5 // pred_region
        // Predicated region
        $region25: #{tpu_custom_call.1} parent=23 // pred_check
          %p170 = pneg %p56
        $region26: #{tpu_custom_call.1} parent=23 // pred_check_branch
          %172 = sbr.rel (%p170) target = $region28
        $region27: #{tpu_custom_call.1} parent=23 // pred_region
          %s173 = sand.u32 %s15, 1
          %s174 = scalar_lea.sflag [#allocation4], %s173
          %s175 = sand.u32 %s46, 1
          %s176 = smul.addr %s175, 8
          %s177 = scalar_lea.vmem [#allocation3], %s176
          %s179 = ssub.s32 128, 128
          %180 = vsyncadd %s174, %s179
          %s181 = smul.addr %s15, 128
          %s182 = scalar_lea.hbm %s1, %s181
          %s184 = sshll.u32 %s177, 4
          %s185 = int_to_ptr.vmem [resolvable:$true] %s184
          %187 = dma.hbm_to_vmem [thread:$0]  %s182, 128, %s185, %s174
        $region28: #{tpu_custom_call.1} parent=23 // pred_fallthru
          _
        // Predicated region
        $region29: #{tpu_custom_call.1} parent=23 // pred_check
          %p188 = pneg %p103
        $region30: #{tpu_custom_call.1} parent=23 // pred_check_branch
          %190 = sbr.rel (%p188) target = $region32
        $region31: #{tpu_custom_call.1} parent=23 // pred_region
          %s191 = sand.u32 %s15, 1
          %s192 = scalar_lea.sflag [#allocation4], %s191
          %s193 = sand.u32 %s93, 1
          %s194 = smul.addr %s193, 4
          %s195 = scalar_lea.vmem [#allocation7], %s194
          %s197 = ssub.s32 64, 64
          %198 = vsyncadd %s192, %s197
          %s199 = smul.addr %s15, 64
          %s200 = scalar_lea.hbm %s3, %s199
          %s202 = sshll.u32 %s195, 4
          %s203 = int_to_ptr.vmem [resolvable:$true] %s202
          %205 = dma.hbm_to_vmem [thread:$0]  %s200, 64, %s203, %s192
        $region32: #{tpu_custom_call.1} parent=23 // pred_fallthru
          _
      $region24: #{tpu_custom_call.1} parent=5 // pred_fallthru
        _
      %p206 = scmp.le.s32.totalorder 1, %s15
      %p207 = scmp.lt.s32.totalorder %s15, 3
      %p208 = pnand %p206, %p207
      %p209 = pneg %p208
      // Predicated region
      $region33: #{tpu_custom_call.1} parent=5 // pred_check
        _
      $region34: #{tpu_custom_call.1} parent=5 // pred_check_branch
        %211 = sbr.rel (%p208) target = $region36
      $region35: #{tpu_custom_call.1} parent=5 // pred_region
        %s212 = ssub.s32 %s15, 1
        %s213 = sand.u32 %s20, 1
        %s214 = scalar_lea.sflag [#allocation4], %s213
        %s215 = sand.u32 %s49, 1
        %s216 = smul.addr %s215, 8
        %s217 = scalar_lea.vmem [#allocation3], %s216
        // Predicated region
        $region37: #{tpu_custom_call.1} parent=35 // pred_check
          %p218 = pneg %p62
        $region38: #{tpu_custom_call.1} parent=35 // pred_check_branch
          %220 = sbr.rel (%p218) target = $region40
        $region39: #{tpu_custom_call.1} parent=35 // pred_region
          %221 = dma.done %s214, 128
        $region40: #{tpu_custom_call.1} parent=35 // pred_fallthru
          _
        // Predicated region
        $region41: #{tpu_custom_call.1} parent=35 // pred_check
          %p222 = pneg %p83
        $region42: #{tpu_custom_call.1} parent=35 // pred_check_branch
          %224 = sbr.rel (%p222) target = $region44
        $region43: #{tpu_custom_call.1} parent=35 // pred_region
          %225 = dma.done [#allocation6], 256
        $region44: #{tpu_custom_call.1} parent=35 // pred_fallthru
          _
        %s226 = sand.u32 %s20, 1
        %s227 = scalar_lea.sflag [#allocation4], %s226
        %s228 = sand.u32 %s96, 1
        %s229 = smul.addr %s228, 4
        %s230 = scalar_lea.vmem [#allocation7], %s229
        // Predicated region
        $region45: #{tpu_custom_call.1} parent=35 // pred_check
          %p231 = pneg %p109
        $region46: #{tpu_custom_call.1} parent=35 // pred_check_branch
          %233 = sbr.rel (%p231) target = $region48
        $region47: #{tpu_custom_call.1} parent=35 // pred_region
          %234 = dma.done %s227, 64
        $region48: #{tpu_custom_call.1} parent=35 // pred_fallthru
          _
        %p235 = pneg %p36
        %p236 = pneg %p33
        %s237 = sand.u32 %s20, 1
        %s238 = scalar_lea.sflag [#allocation4], %s237
        %s239 = sand.u32 %s49, 1
        %s240 = smul.addr %s239, 8
        %s241 = scalar_lea.vmem [#allocation3], %s240
        %p242 = pneg %p62
        %p243 = pneg %p59
        %p244 = pneg %p83
        %p245 = pneg %p80
        %s246 = sand.u32 %s20, 1
        %s247 = scalar_lea.sflag [#allocation4], %s246
        %s248 = sand.u32 %s96, 1
        %s249 = smul.addr %s248, 4
        %s250 = scalar_lea.vmem [#allocation7], %s249
        %p251 = pneg %p109
        %p252 = pneg %p106
        %p253 = pneg %p135
        %p254 = pneg %p132
        %p255 = scmp.lt.s32.totalorder %s20, 1
        %s256 = scalar_select %p255, %s20, 1
        %s257 = smul.addr %s256, 8
        %s258 = scalar_lea.vmem %s4, %s257
        %p259 = scmp.lt.s32.totalorder %s20, 1
        %s260 = scalar_select %p259, %s20, 1
        %s261 = smul.addr %s260, 8
        %s262 = scalar_lea.vmem %s4, %s261
        %v264 = vld [vmem:[%s217] sm:$0xff]
        %v265 = vld [vmem:[#allocation5] sm:$0xf]
        %v266 = vld [vmem:[#allocation5 + $0x4] sm:$0xf]
        %v267 = vld [vmem:[#allocation5 + $0x8] sm:$0xf]
        %v268 = vld [vmem:[#allocation5 + $0xc] sm:$0xf]
        %v269 = vld [vmem:[%s230] sm:$0xf]
        %v270 = vunpack.c.l.bf16 %v269
        %s271 = sld [smem:[#allocation2]]
        %v272 = vmul.f32 %v264, %v264
        %273 = vadd.xlane.f32.xlu0 %v272
        %v274 = vpop.xlane.xlu0 %273
        %v275 = vadd.f32 %v274, 1e-16
        %v276 = vrsqrt.pop %v275
        %v277 = vstv %s271
        %v278 = vrcp.pop %v277
        %v279 = vmul.f32 %v276, %v278
        %v280 = vmul.f32 %v264, %v279
        %v281 = vpack.c.bf16 %v280, %v280
        %v286 = vunpack.c.l.b16 %v265
        %v287 = vunpack.c.l.b16 %v266
        %v288 = vunpack.c.l.b16 %v267
        %v289 = vunpack.c.l.b16 %v268
        %v290 = vpack.c.b16 %v287, %v286
        %v291 = vpack.c.b16 %v289, %v288
        %294 = vmatprep.subr.bf16.mxu0 0
        %295 = vmatpush1.bf16.xpose.msra.mxu0 0
        %296 = vmatprep.subr.bf16.mxu0 0
        %297 = vmatpush1.bf16.xpose.msra.mxu0 0
        %298 = vmatprep.subr.bf16.mxu0 0
        %299 = vmatpush1.bf16.xpose.msra.mxu0 0
        %300 = vmatprep.subr.bf16.mxu0 0
        %301 = vmatpush1.bf16.xpose.msra.mxu0 0
        %302 = vmatprep.subr.bf16.mxu0 0
        %303 = vmatpush1.bf16.xpose.msra.mxu0 0
        %304 = vmatprep.subr.bf16.mxu0 0
        %305 = vmatpush1.bf16.xpose.msra.mxu0 0
        %306 = vmatprep.subr.bf16.mxu0 0
        %307 = vmatpush1.bf16.xpose.msra.mxu0 %v291
        %308 = vmatprep.subr.bf16.mxu0 0
        %309 = vmatpush1.bf16.xpose.msra.mxu0 %v290
        %310 = vmatprep.subr.bf16.mxu0 0
        %311 = vmatpush2.bf16.xpose.msra.mxu0 0
        %312 = vmatprep.subr.bf16.mxu0 0
        %313 = vmatpush2.bf16.xpose.msra.mxu0 0
        %314 = vmatprep.subr.bf16.mxu0 0
        %315 = vmatpush2.bf16.xpose.msra.mxu0 0
        %316 = vmatprep.subr.bf16.mxu0 0
        %317 = vmatpush2.bf16.xpose.msra.mxu0 0
        %318 = vmatprep.subr.bf16.mxu0 0
        %319 = vmatpush2.bf16.xpose.msra.mxu0 0
        %320 = vmatprep.subr.bf16.mxu0 0
        %321 = vmatpush2.bf16.xpose.msra.mxu0 0
        %322 = vmatprep.subr.bf16.mxu0 0
        %323 = vmatpush2.bf16.xpose.msra.mxu0 0
        %324 = vmatprep.subr.bf16.mxu0 0
        %325 = vmatpush2.bf16.xpose.msra.mxu0 0
        %326 = vmatprep.mubr.bf16.mxu0 0
        %327 = vmatmul.mubr.bf16.gmra.mxu0 %v281
        %v328 = vpop.f32.mrf.mxu0
        %v329 = vadd.f32 0.0, %v328
        %v330 = vpop.f32.mrf.mxu0
        %v331 = vpop.f32.mrf.mxu0
        %v332 = vpop.f32.mrf.mxu0
        %333 = vdwg.mxu0
        %vm334 = vcmask 261120
        %v335 = vsel %vm334, %v329, -inf
        %336 = vmax.xlane.f32.xlu0 %v335
        %v337 = vpop.xlane.xlu0 %336
        %v338 = vsub.f32 %v329, %v337
        %v339 = vmul.f32 %v338, 1.442695
        %v340 = vpow.pop %v339
        %v341 = vsel %vm334, %v340, 0.0
        %342 = vadd.xlane.f32.xlu0 %v341
        %v343 = vpop.xlane.xlu0 %342
        %v344 = vrcp.pop %v343
        %v345 = vmul.f32 1.0, %v344
        %v346 = vmul.f32 %v340, %v345
        %v347 = vmul.f32 %v346, 1.442695
        %v348 = vpow.pop %v347
        %v349 = vsel %vm334, %v348, 0.0
        %350 = vadd.xlane.f32.xlu0 %v349
        %v351 = vpop.xlane.xlu0 %350
        %v352 = vlog2.pop %v351
        %v353 = vmul.f32 %v352, 0.6931472
        %v354 = vmul.f32 %v280, %v270
        %355 = vadd.xlane.f32.xlu0 %v354
        %v356 = vpop.xlane.xlu0 %355
        %v357 = vsub.f32 %v356, %v337
        %v358 = vmul.f32 %v357, 1.442695
        %v359 = vpow.pop %v358
        %v360 = vmul.f32 %v359, %v345
        %v361 = vsub.f32 %v353, %v360
        %vm362 = vcmask 7168
        %363 = vst.msk [vmem:[%s262] sm:$0xff] %vm362, %v361
        %p364 = scmp.lt.s32.totalorder %s20, 1
        %s365 = scalar_select %p364, %s20, 1
        %s366 = smul.addr %s365, 8
        %s367 = scalar_lea.vmem %s4, %s366
        // Predicated region
        $region49: #{tpu_custom_call.1} parent=35 // pred_check
          %p368 = pneg %p132
        $region50: #{tpu_custom_call.1} parent=35 // pred_check_branch
          %370 = sbr.rel (%p368) target = $region52
        $region51: #{tpu_custom_call.1} parent=35 // pred_region
          _
        $region52: #{tpu_custom_call.1} parent=35 // pred_fallthru
          _
      $region36: #{tpu_custom_call.1} parent=5 // pred_fallthru
        _
      %p371 = scmp.le.s32.totalorder 2, %s15
      // Predicated region
      $region53: #{tpu_custom_call.1} parent=5 // pred_check
        %p372 = pneg %p371
      $region54: #{tpu_custom_call.1} parent=5 // pred_check_branch
        %374 = sbr.rel (%p372) target = $region56
      $region55: #{tpu_custom_call.1} parent=5 // pred_region
        %s375 = ssub.s32 %s15, 2
        // Predicated region
        $region57: #{tpu_custom_call.1} parent=55 // pred_check
          %p376 = pneg %p138
        $region58: #{tpu_custom_call.1} parent=55 // pred_check_branch
          %378 = sbr.rel (%p376) target = $region60
        $region59: #{tpu_custom_call.1} parent=55 // pred_region
          %p379 = scmp.lt.s32.totalorder %s21, 1
          %s380 = scalar_select %p379, %s21, 1
          %s381 = smul.addr %s380, 8
          %s382 = scalar_lea.vmem %s4, %s381
        $region60: #{tpu_custom_call.1} parent=55 // pred_fallthru
          _
      $region56: #{tpu_custom_call.1} parent=5 // pred_fallthru
        _
    $region6: #{tpu_custom_call.1} parent=1 // loop_footer
      %s19 = sadd.s32 1, %s15
    $region7: #{tpu_custom_call.1} parent=1 // loop_footer_branch
      %14 = sbr.rel target = $region3
    $region8: #{tpu_custom_call.1} parent=1 // loop_exit
      _
    %383 = vsyncpa [#allocation4], 1
    %s384 = scalar_lea.sflag [#allocation4], 1
    %385 = vsyncpa %s384, 1
    %386 = vsyncpa [#allocation6], 1

</llo_original>
